<compile_context>
chip_gen: v7x
topology: tpu7x:2x2x1
jax: 0.10.0
libtpu: 0.0.40
codegen_flags: <defaults>
</compile_context>

<pallas_src>
import functools

import jax
import jax.numpy as jnp
from jax import lax
from jax.experimental import pallas as pl
from jax.experimental.pallas import tpu as pltpu

# Peel loop costs 2 XLU lane-reduces per step (k-1 steps); the radix select is
# a fixed 32 steps with 1 reduce each -> crossover at 2*(k-1) ~= 32.
_PEEL_MAX_K = 16
_I32_SIGN = -(2 ** 31)          # 0x80000000
_I32_REST = 2 ** 31 - 1         # 0x7FFFFFFF


def _kth_largest_peel(x, k):
    """Exact k-th largest per row by peeling one occurrence of the max, k-1 times.

    Works in the native dtype (max / == / select introduce no rounding), so
    bf16 inputs stay 16x128 per vreg and need no f32 temporaries.
    """
    _, Hb = x.shape
    if k > 1:
        # (1, Hb) iota only on the k>1 path: no block-sized int32 constant
        # kept live across the peel loop (and nothing at all for k == 1).
        col_ids = lax.broadcasted_iota(jnp.int32, (1, Hb), 1)
        neg_inf = jnp.asarray(-jnp.inf, dtype=x.dtype)

        def peel_once(cur):
            # 2 exact XLU lane reduces per peel: row max + first index of that
            # max.  torch.topk duplicate semantics require removing exactly one
            # occurrence of the true max, so both reductions stay exact.
            # (A fused argmax-style reduce is a measured follow-up.)
            m = jnp.max(cur, axis=1, keepdims=True)
            idx = jnp.min(jnp.where(cur == m, col_ids, Hb), axis=1, keepdims=True)
            return jnp.where(col_ids == idx, neg_inf, cur)

        x = lax.fori_loop(0, k - 1, lambda _, c: peel_once(c), x,
                          unroll=(k <= 9))
    return jnp.max(x, axis=1, keepdims=True)              # (TB, 1)


def _kth_largest_radix(xf, k):
    """Exact k-th largest per row via a 32-step MSB-first radix select.

    Fixed cost independent of k: per bit, a couple of VPU bit ops + compare and
    one XLU sum-reduce over the block, on a monotonic int32 key whose total
    order equals the float order (torch duplicate semantics preserved).
    """
    TB, _ = xf.shape
    b = pltpu.bitcast(xf, jnp.int32)
    # Monotonic key: signed-int32 order of `key` == float order of `xf`.
    key = jnp.where(b >= 0, b, b ^ jnp.int32(_I32_REST))
    # Flip the sign bit so the raw bit pattern (MSB-first) carries the order.
    ukey = key ^ jnp.int32(_I32_SIGN)

    def bit_step(j, carry):
        prefix, kk = carry                                  # (TB,1) int32 each
        bit = 31 - j
        bitval = jnp.left_shift(jnp.int32(1), bit)
        inc_mask = jnp.left_shift(jnp.int32(-1), bit)       # bits [31..bit] set
        cand = prefix | bitval
        cnt = jnp.sum(((ukey & inc_mask) == cand).astype(jnp.int32),
                      axis=1, keepdims=True)
        take = cnt >= kk
        prefix = jnp.where(take, cand, prefix)
        kk = jnp.where(take, kk, kk - cnt)
        return prefix, kk

    prefix0 = jnp.zeros((TB, 1), jnp.int32)
    kk0 = jnp.full((TB, 1), k, jnp.int32)
    prefix, _ = lax.fori_loop(0, 32, bit_step, (prefix0, kk0))
    # Undo the key transform and reinterpret as the float threshold.
    tkey = prefix ^ jnp.int32(_I32_SIGN)
    tbits = jnp.where(tkey >= 0, tkey, tkey ^ jnp.int32(_I32_REST))
    return pltpu.bitcast(tbits, jnp.float32)                # (TB, 1)


def _kwta_kernel(x_ref, o_ref, *, k: int):
    """One block = (TB, H) rows; rows are fully independent."""
    x = x_ref[...]
    if k <= _PEEL_MAX_K:
        topval = _kth_largest_peel(x, k)                    # native dtype
        keep = x >= topval
    else:
        xf = x.astype(jnp.float32)                          # exact for bf16/f32
        keep = xf >= _kth_largest_radix(xf, k)
    # Reproduces torch's `comp * x` exactly (dropped elems become 0.0 * x,
    # i.e. -0.0 for negative finite x) at the same VPU cost as cmp+cast+mul.
    o_ref[...] = jnp.where(keep, x, x * 0.0).astype(o_ref.dtype)


def _pick_row_tile(batch: int, h: int, itemsize: int) -> int:
    """Row-tile size: ~2 MiB input tiles, and >=2 grid steps when batch allows.

    Live-VMEM budget: 2x double-buffered input + 2x output tiles ~= 8 MiB plus
    in-kernel temporaries -- inside the smallest scoped-VMEM default across
    generations (v5e 16 MiB; v6e/v7x 32 MiB; v7x physical VMEM is only 64 MiB),
    while large enough (>=2 MiB) to sit near the measured HBM roofline.
    """
    if batch <= 8:
        return batch                       # full-dim block is always legal
    target_bytes = 2 * 1024 * 1024
    row_bytes = max(1, h * itemsize)
    tb = (target_bytes // row_bytes) // 8 * 8
    tb = min(tb, 2048)
    # Guarantee >= 2 grid steps so dimension_semantics=("parallel",) can shard
    # row tiles across v7x's two TensorCores (harmless on 1-TC v5e/v6e).
    half = (batch // 2) // 8 * 8
    tb = min(tb, max(8, half))
    return max(8, tb)


def sparsify1d_kactive(x: jax.Array, k: int = 1) -> jax.Array:
    """Pallas kWTA: zero out everything below the k-th largest value per row."""
    assert x.ndim == 2, "expected (B, H)"
    assert jnp.issubdtype(x.dtype, jnp.floating), "kWTA expects float activations"
    B, H = x.shape
    if not (1 <= k <= H):
        raise ValueError(f"k must be in [1, H={H}], got {k}")

    TB = _pick_row_tile(B, H, jnp.dtype(x.dtype).itemsize)
    grid = (pl.cdiv(B, TB),)
    kernel = functools.partial(_kwta_kernel, k=k)
    return pl.pallas_call(
        kernel,
        out_shape=jax.ShapeDtypeStruct((B, H), x.dtype),
        grid=grid,
        # Full-H last block dim (legal even when H % 128 != 0): no wrapper
        # pad/slice HBM round trips; partial final row block is masked.
        in_specs=[pl.BlockSpec((TB, H), lambda i: (i, 0))],
        out_specs=pl.BlockSpec((TB, H), lambda i: (i, 0)),
        compiler_params=pltpu.CompilerParams(
            dimension_semantics=("parallel",)),
    )(x)


def _reference(x: jax.Array, k: int) -> jax.Array:
    # Pure-JAX reference matching torch.topk semantics.
    topval = jnp.sort(x, axis=1)[:, -k][:, None]     # k-th largest per row
    return (x >= topval).astype(x.dtype) * x


if __name__ == "__main__":
    key = jax.random.PRNGKey(0)
    B, H = 2, 32          # small (B, hidden) input consistent with the module
    x = jax.random.normal(key, (B, H), dtype=jnp.float32)

    for k in (1, 3):      # module default k=1; k=3 exercises the peel loop
        out = jax.block_until_ready(sparsify1d_kactive(x, k=k))
        ref = _reference(x, k)
        assert out.shape == x.shape and out.dtype == x.dtype
        assert jnp.array_equal(out, ref), f"Pallas kWTA mismatch vs reference (k={k})"

    # ties at the k-th value must all be kept (torch >= semantics)
    x_tie = x.at[0, :4].set(7.0)
    out_tie = jax.block_until_ready(sparsify1d_kactive(x_tie, k=2))
    assert jnp.array_equal(out_tie, _reference(x_tie, 2)), "tie-handling mismatch"

    # H > 128 and not a multiple of 128: exercises the unpadded full-H block
    x2 = jax.random.normal(jax.random.PRNGKey(1), (4, 160), dtype=jnp.float32)
    out2 = jax.block_until_ready(sparsify1d_kactive(x2, k=5))
    assert jnp.array_equal(out2, _reference(x2, 5)), "odd-H mismatch"

    # large k exercises the fixed-cost radix-select branch
    x3 = jax.random.normal(jax.random.PRNGKey(2), (4, 64), dtype=jnp.float32)
    out3 = jax.block_until_ready(sparsify1d_kactive(x3, k=20))
    assert jnp.array_equal(out3, _reference(x3, 20)), "radix-select mismatch"

    # bf16 path (native-dtype peel, no f32 temporaries)
    x4 = jax.random.normal(jax.random.PRNGKey(3), (8, 128), dtype=jnp.bfloat16)
    out4 = jax.block_until_ready(sparsify1d_kactive(x4, k=4))
    assert jnp.array_equal(out4, _reference(x4, 4)), "bf16 mismatch"

    print("KERNEL_OK")
</pallas_src>

<mosaic_0001>
module attributes {stable_mosaic.version = 11 : i64} {
  func.func @_kwta_kernel(%arg0: i32, %arg1: memref<2x32xf32, #tpu.memory_space<vmem>>, %arg2: memref<2x32xf32, #tpu.memory_space<vmem>>) attributes {dimension_semantics = [#tpu.dimension_semantics<parallel>], iteration_bounds = array<i64: 1>, scalar_prefetch = 0 : i64, scratch_operands = 0 : i64, tpu.core_type = #tpu.core_type<tc>, window_params = [{transform_indices = @transform_0, window_bounds = array<i64: 2, 32>}, {transform_indices = @transform_1, window_bounds = array<i64: 2, 32>}]} {
    %c0 = arith.constant 0 : index
    %c0_0 = arith.constant 0 : index
    %0 = vector.load %arg1[%c0, %c0_0] : memref<2x32xf32, #tpu.memory_space<vmem>>, vector<2x32xf32>
    %cst = arith.constant dense<0xFF800000> : vector<2xf32>
    %1 = vector.multi_reduction <maximumf>, %0, %cst [1] : vector<2x32xf32> to vector<2xf32>
    %2 = vector.shape_cast %1 : vector<2xf32> to vector<2x1xf32>
    %3 = vector.broadcast %2 : vector<2x1xf32> to vector<2x32xf32>
    %4 = arith.cmpf oge, %0, %3 : vector<2x32xf32>
    %cst_1 = arith.constant 0.000000e+00 : f32
    %5 = vector.broadcast %cst_1 : f32 to vector<2x32xf32>
    %6 = arith.mulf %0, %5 : vector<2x32xf32>
    %7 = arith.select %4, %0, %6 : vector<2x32xi1>, vector<2x32xf32>
    %c0_2 = arith.constant 0 : index
    %c0_3 = arith.constant 0 : index
    %8 = vector.load %arg2[%c0_2, %c0_3] : memref<2x32xf32, #tpu.memory_space<vmem>>, vector<2x32xf32>
    tpu.vector_store %arg2[%c0_2, %c0_3], %7 {strides = array<i32>} : memref<2x32xf32, #tpu.memory_space<vmem>>, vector<2x32xf32>,
    return
  }
  func.func @transform_0(%arg0: i32) -> (i32, i32) {
    %c0_i32 = arith.constant 0 : i32
    %c0_i32_0 = arith.constant 0 : i32
    return %arg0, %c0_i32 : i32, i32
  }
  func.func @transform_1(%arg0: i32) -> (i32, i32) {
    %c0_i32 = arith.constant 0 : i32
    %c0_i32_0 = arith.constant 0 : i32
    return %arg0, %c0_i32 : i32, i32
  }
}

</mosaic_0001>

<llo_original>
// kernel: tpu_custom_call.1
$region0: #{tpu_custom_call.1}
  #allocation0 [shape = 'u32[]', space=smem, size = 0x4, offset = 0x4, fixed_abs, tag = 'smem constant byte address 0x4 - core index']
  #allocation1 [shape = 'u32[144,128]{1,0:T(1,128)}', space=vmem, size = 0x12000, scoped, tag = 'internal scratch']
  %s0 = inlined_call_operand.hbm [shape: f32[2,32], index: 0, kind: input, shape index: {}]
  %s1 = inlined_call_operand.hbm [shape: f32[2,32], index: 1, kind: output, shape index: {}]
  %s2 = sld [smem:[#allocation0]]
  $region18: #{tpu_custom_call.1} parent=0
    _
  %s4 = ssub.s32 1, %s2
  %s5 = scalar_select 0, %s4, %s2
  $region1: #{tpu_custom_call.1} parent=0
    #allocation2 [shape = 'u8[1024]{0}', space=vmem, size = 0x400, scoped, tag = 'input window, operand 0, single buffered']
    #allocation3 [shape = 's32[1]{0}', space=sflag, size = 0x4, scoped, tag = 'scoped memory for tpu_custom_call.1']
    #allocation4 [shape = 's32[1]{0}', space=sflag, size = 0x4, scoped, tag = 'scoped memory for tpu_custom_call.1']
    #allocation5 [shape = 'u8[1024]{0}', space=vmem, size = 0x400, scoped, tag = 'output window, operand 0, single buffered']
    %6 = vsyncpa [#allocation3], 0
    %7 = vsyncpa [#allocation4], 0
    // Predicated region
    $region2: #{tpu_custom_call.1} parent=1 // pred_check
      _
    $region3: #{tpu_custom_call.1} parent=1 // pred_check_branch
      %9 = sbr.rel (0) target = $region5
    $region4: #{tpu_custom_call.1} parent=1 // pred_region
      %s11 = ssub.s32 32, 32
      %12 = vsyncadd [#allocation3], %s11
      %s14 = sshll.u32 [#allocation2], 4
      %s15 = int_to_ptr.vmem [resolvable:$true] %s14
      %17 = dma.hbm_to_vmem [thread:$0]  %s0, 32, %s15, [#allocation3]
    $region5: #{tpu_custom_call.1} parent=1 // pred_fallthru
      _
    // Predicated region
    $region6: #{tpu_custom_call.1} parent=1 // pred_check
      _
    $region7: #{tpu_custom_call.1} parent=1 // pred_check_branch
      %19 = sbr.rel (0) target = $region9
    $region8: #{tpu_custom_call.1} parent=1 // pred_region
      %20 = dma.done [#allocation3], 32
    $region9: #{tpu_custom_call.1} parent=1 // pred_fallthru
      _
    %v21 = vld [vmem:[#allocation2] sm:$0x3]
    %vm22 = vcmask 254976
    %v23 = vsel %vm22, %v21, -inf
    %24 = vmax.xlane.f32.xlu0 %v23
    %v25 = vpop.xlane.xlu0 %24
    %vm26 = vcmp.ge.f32.partialorder %v21, %v25
    %v27 = vmul.f32 %v21, 0.0
    %v28 = vsel %vm26, %v21, %v27
    %29 = vst.msk [vmem:[#allocation5] sm:$0x3] %vm22, %v28
    // Predicated region
    $region10: #{tpu_custom_call.1} parent=1 // pred_check
      _
    $region11: #{tpu_custom_call.1} parent=1 // pred_check_branch
      %31 = sbr.rel (0) target = $region13
    $region12: #{tpu_custom_call.1} parent=1 // pred_region
      %s33 = ssub.s32 32, 32
      %34 = vsyncadd [#allocation4], %s33
      %s36 = sshll.u32 [#allocation5], 4
      %s37 = int_to_ptr.vmem [resolvable:$true] %s36
      %39 = dma.vmem_to_hbm [thread:$0]  %s37, 32, %s1, [#allocation4]
    $region13: #{tpu_custom_call.1} parent=1 // pred_fallthru
      _
    // Predicated region
    $region14: #{tpu_custom_call.1} parent=1 // pred_check
      _
    $region15: #{tpu_custom_call.1} parent=1 // pred_check_branch
      %41 = sbr.rel (0) target = $region17
    $region16: #{tpu_custom_call.1} parent=1 // pred_region
      %42 = dma.done [#allocation4], 32
    $region17: #{tpu_custom_call.1} parent=1 // pred_fallthru
      _
    %43 = vsyncpa [#allocation3], 1
    %44 = vsyncpa [#allocation4], 1

</llo_original>
